<compile_context>
chip_gen: v7x
topology: tpu7x:2x2x1
jax: 0.10.0
libtpu: 0.0.40
codegen_flags: <defaults>
</compile_context>

<pallas_src>
import functools

import jax
import jax.numpy as jnp
from jax.experimental import pallas as pl
from jax.experimental.pallas import tpu as pltpu


# ----------------------------------------------------------------------------
# Fused bidirectional LSTM — one pallas_call, grid=(2,) over directions
# ----------------------------------------------------------------------------
def _bilstm_kernel(T, B, H, emb_ref, pemb_ref, we_ref, wp_ref, b_ref, whh_ref,
                   out_ref, xproj_scr):
    """grid axis 0 = direction (0: forward, 1: backward).

    PyTorch gate order (i, f, g, o); biases b_ih + b_hh pre-folded.
    """
    d = pl.program_id(0)
    reverse = d == 1

    # Hoisted input projection for the whole sequence: one well-shaped MXU
    # matmul per embedding table instead of T tiny per-step matmuls.
    # (T*B, 4H) f32, resident in VMEM scratch for the recurrence.
    xproj_scr[...] = (
        jnp.dot(emb_ref[...], we_ref[...], preferred_element_type=jnp.float32)
        + jnp.dot(pemb_ref[...], wp_ref[...], preferred_element_type=jnp.float32)
        + b_ref[...]
    )

    whh = whh_ref[...]  # (H, 4H) bf16, loaded once, stays in vregs

    def step(s, carry):
        h, c = carry                                   # (B, H) f32 in vregs
        t = jnp.where(reverse, T - 1 - s, s)           # time index this step
        gates = xproj_scr[pl.ds(t * B, B), :] + jnp.dot(
            h.astype(jnp.bfloat16), whh, preferred_element_type=jnp.float32)

        # TODO(synk): with H < 128 these gate slices are sub-lane (masked) ops;
        # a lane-padded (B, 4, H_pad) gate layout would make them pure VPU/EUP.
        i_g = jax.nn.sigmoid(gates[:, 0 * H:1 * H])
        f_g = jax.nn.sigmoid(gates[:, 1 * H:2 * H])
        g_g = jnp.tanh(gates[:, 2 * H:3 * H])
        o_g = jax.nn.sigmoid(gates[:, 3 * H:4 * H])

        c_new = f_g * c + i_g * g_g
        h_new = o_g * jnp.tanh(c_new)

        out_ref[t] = h_new.astype(out_ref.dtype)
        return h_new, c_new

    h0 = jnp.zeros((B, H), jnp.float32)
    c0 = jnp.zeros((B, H), jnp.float32)
    jax.lax.fori_loop(0, T, step, (h0, c0))


def bilstm(emb_t, pemb_t, we_t, wp_t, b, whh_t, *, T, B):
    """emb_t/pemb_t: (T*B, E)/(T*B, P) bf16, time-major rows (t*B + b).

    Returns (2, T, B, H) bf16 hidden states: [0]=forward, [1]=backward,
    time-aligned like torch's bidirectional output.
    """
    E = emb_t.shape[1]
    P = pemb_t.shape[1]
    H = whh_t.shape[1]

    kernel = functools.partial(_bilstm_kernel, T, B, H)
    return pl.pallas_call(
        kernel,
        out_shape=jax.ShapeDtypeStruct((2, T, B, H), jnp.bfloat16),
        grid_spec=pltpu.PrefetchScalarGridSpec(
            num_scalar_prefetch=0,
            grid=(2,),
            in_specs=[
                pl.BlockSpec((T * B, E), lambda d: (0, 0)),
                pl.BlockSpec((T * B, P), lambda d: (0, 0)),
                pl.BlockSpec((None, E, 4 * H), lambda d: (d, 0, 0)),
                pl.BlockSpec((None, P, 4 * H), lambda d: (d, 0, 0)),
                pl.BlockSpec((None, 1, 4 * H), lambda d: (d, 0, 0)),
                pl.BlockSpec((None, H, 4 * H), lambda d: (d, 0, 0)),
            ],
            out_specs=pl.BlockSpec((None, T, B, H), lambda d: (d, 0, 0, 0)),
            scratch_shapes=[pltpu.VMEM((T * B, 4 * H), jnp.float32)],
        ),
        compiler_params=pltpu.CompilerParams(
            dimension_semantics=("parallel",)),
    )(emb_t, pemb_t, we_t, wp_t, b, whh_t)


# ----------------------------------------------------------------------------
# Head: fc1 -> fc2 -> log_softmax, tiled over rows; 2H concat folded into
# split fc1 weights (no concatenate of the two direction outputs needed).
# ----------------------------------------------------------------------------
def _head_kernel(hf_ref, hb_ref, w1f_ref, w1b_ref, b1_ref, w2_ref, b2_ref,
                 out_ref):
    h1 = (jnp.dot(hf_ref[...], w1f_ref[...], preferred_element_type=jnp.float32)
          + jnp.dot(hb_ref[...], w1b_ref[...], preferred_element_type=jnp.float32)
          + b1_ref[...])
    logits = jnp.dot(h1.astype(jnp.bfloat16), w2_ref[...],
                     preferred_element_type=jnp.float32) + b2_ref[...]
    m = jnp.max(logits, axis=-1, keepdims=True)
    z = logits - m
    lse = jnp.log(jnp.sum(jnp.exp(z), axis=-1, keepdims=True))
    out_ref[...] = z - lse


def head(hf, hb, w1f_t, w1b_t, b1, w2_t, b2, *, block_n=256):
    """hf, hb: (N, H) bf16. Returns (N, num_tags) f32 log-probabilities."""
    N, H = hf.shape
    F1 = w1f_t.shape[1]
    NT = w2_t.shape[1]
    tn = min(block_n, N)
    return pl.pallas_call(
        _head_kernel,
        out_shape=jax.ShapeDtypeStruct((N, NT), jnp.float32),
        grid_spec=pltpu.PrefetchScalarGridSpec(
            num_scalar_prefetch=0,
            grid=(pl.cdiv(N, tn),),
            in_specs=[
                pl.BlockSpec((tn, H), lambda i: (i, 0)),
                pl.BlockSpec((tn, H), lambda i: (i, 0)),
                pl.BlockSpec((H, F1), lambda i: (0, 0)),
                pl.BlockSpec((H, F1), lambda i: (0, 0)),
                pl.BlockSpec((1, F1), lambda i: (0, 0)),
                pl.BlockSpec((F1, NT), lambda i: (0, 0)),
                pl.BlockSpec((1, NT), lambda i: (0, 0)),
            ],
            out_specs=pl.BlockSpec((tn, NT), lambda i: (i, 0)),
        ),
        compiler_params=pltpu.CompilerParams(
            dimension_semantics=("parallel",)),
    )(hf, hb, w1f_t, w1b_t, b1, w2_t, b2)


# ----------------------------------------------------------------------------
# Full Net forward
# ----------------------------------------------------------------------------
@jax.jit
def net_forward(params, s, pos):
    B, T = s.shape
    H = params["whh_t"].shape[1]

    # Embedding lookups, gathered directly in time-major order (glue JAX).
    # No (B,T,E+P) concat is materialized: the split is folded into We/Wp.
    emb_t = jnp.take(params["embedding"], s.T, axis=0).reshape(T * B, -1)
    pemb_t = jnp.take(params["pos_embedding"], pos.T, axis=0).reshape(T * B, -1)

    h = bilstm(emb_t, pemb_t, params["we_t"], params["wp_t"], params["b"],
               params["whh_t"], T=T, B=B)                 # (2, T, B, H) bf16

    hf = h[0].reshape(T * B, H)
    hb = h[1].reshape(T * B, H)

    out_tm = head(hf, hb, params["w1f_t"], params["w1b_t"], params["b1"],
                  params["w2_t"], params["b2"])           # (T*B, NT), time-major

    # Only the tiny final output is permuted to PyTorch's (b, t) row order.
    NT = out_tm.shape[-1]
    return out_tm.reshape(T, B, NT).transpose(1, 0, 2).reshape(B * T, NT)


# ----------------------------------------------------------------------------
# Deterministic parameters (torch layout) + conversion to kernel layout
# ----------------------------------------------------------------------------
def make_torch_params(key, *, vocab, emb_dim, n_pos, pos_dim, hidden, fc1,
                      n_tags):
    ks = jax.random.split(key, 16)
    D = emb_dim + pos_dim
    H = hidden

    def rnd(k, shape, scale=0.1):
        return jax.random.normal(k, shape, dtype=jnp.float32) * scale

    # nn.LSTM: weight_ih (4H, D), weight_hh (4H, H), biases (4H,), gate order
    # i, f, g, o.  nn.Linear: weight (out, in), bias (out,).
    return {
        "embedding": rnd(ks[0], (vocab, emb_dim)),
        "pos_embedding": rnd(ks[1], (n_pos, pos_dim)),
        "wih_f": rnd(ks[2], (4 * H, D)), "whh_f": rnd(ks[3], (4 * H, H)),
        "bih_f": rnd(ks[4], (4 * H,)), "bhh_f": rnd(ks[5], (4 * H,)),
        "wih_b": rnd(ks[6], (4 * H, D)), "whh_b": rnd(ks[7], (4 * H, H)),
        "bih_b": rnd(ks[8], (4 * H,)), "bhh_b": rnd(ks[9], (4 * H,)),
        "w1": rnd(ks[10], (fc1, 2 * H)), "b1": rnd(ks[11], (fc1,)),
        "w2": rnd(ks[12], (n_tags, fc1)), "b2": rnd(ks[13], (n_tags,)),
    }


def prepare_params(tp):
    """torch layout -> fused-kernel layout (bf16 matmul operands, f32 biases)."""
    E = tp["embedding"].shape[1]
    H = tp["whh_f"].shape[1]
    bf16 = jnp.bfloat16

    def split_ih(wih):                    # (4H, E+P) -> (E, 4H), (P, 4H)
        w = wih.T
        return w[:E], w[E:]

    we_f, wp_f = split_ih(tp["wih_f"])
    we_b, wp_b = split_ih(tp["wih_b"])
    w1_t = tp["w1"].T                     # (2H, F1)

    return {
        "embedding": tp["embedding"].astype(bf16),
        "pos_embedding": tp["pos_embedding"].astype(bf16),
        "we_t": jnp.stack([we_f, we_b]).astype(bf16),             # (2, E, 4H)
        "wp_t": jnp.stack([wp_f, wp_b]).astype(bf16),             # (2, P, 4H)
        "whh_t": jnp.stack([tp["whh_f"].T, tp["whh_b"].T]).astype(bf16),
        "b": jnp.stack([(tp["bih_f"] + tp["bhh_f"]).reshape(1, 4 * H),
                        (tp["bih_b"] + tp["bhh_b"]).reshape(1, 4 * H)]),
        "w1f_t": w1_t[:H].astype(bf16),                           # fwd half
        "w1b_t": w1_t[H:].astype(bf16),                           # bwd half
        "b1": tp["b1"].reshape(1, -1),
        "w2_t": tp["w2"].T.astype(bf16),
        "b2": tp["b2"].reshape(1, -1),
    }


if __name__ == "__main__":
    # Small, forward-consistent sizes.
    B, T = 2, 8
    VOCAB, EMB_DIM = 20, 24
    N_POS, POS_DIM = 10, 8
    HIDDEN, FC1, N_TAGS = 32, 64, 6

    key = jax.random.PRNGKey(0)
    k_params, k_s, k_pos = jax.random.split(key, 3)

    tparams = make_torch_params(k_params, vocab=VOCAB, emb_dim=EMB_DIM,
                                n_pos=N_POS, pos_dim=POS_DIM, hidden=HIDDEN,
                                fc1=FC1, n_tags=N_TAGS)
    params = prepare_params(tparams)

    s = jax.random.randint(k_s, (B, T), 0, VOCAB, dtype=jnp.int32)
    pos = jax.random.randint(k_pos, (B, T), 0, N_POS, dtype=jnp.int32)

    out = net_forward(params, s, pos)            # (B*T, N_TAGS) log-probs
    jax.block_until_ready(out)

    assert out.shape == (B * T, N_TAGS)
    # log_softmax rows should sum (in prob space) to ~1.
    assert bool(jnp.allclose(jnp.sum(jnp.exp(out), axis=1), 1.0, atol=1e-3))

    print("KERNEL_OK")
</pallas_src>

<mosaic_0001>
module attributes {stable_mosaic.version = 11 : i64} {
  func.func @_bilstm_kernel(%arg0: i32, %arg1: memref<16x24xbf16, #tpu.memory_space<vmem>>, %arg2: memref<16x8xbf16, #tpu.memory_space<vmem>>, %arg3: memref<1x24x128xbf16, #tpu.memory_space<vmem>>, %arg4: memref<1x8x128xbf16, #tpu.memory_space<vmem>>, %arg5: memref<1x1x128xf32, #tpu.memory_space<vmem>>, %arg6: memref<1x32x128xbf16, #tpu.memory_space<vmem>>, %arg7: memref<1x8x2x32xbf16, #tpu.memory_space<vmem>>, %arg8: memref<16x128xf32, #tpu.memory_space<vmem>>) attributes {dimension_semantics = [#tpu.dimension_semantics<parallel>], iteration_bounds = array<i64: 2>, scalar_prefetch = 0 : i64, scratch_operands = 1 : i64, tpu.core_type = #tpu.core_type<tc>, window_params = [{pipeline_mode = #tpu.pipeline_mode<synchronous>, transform_indices = @transform_0, window_bounds = array<i64: 16, 24>}, {pipeline_mode = #tpu.pipeline_mode<synchronous>, transform_indices = @transform_1, window_bounds = array<i64: 16, 8>}, {transform_indices = @transform_2, window_bounds = array<i64: 1, 24, 128>}, {transform_indices = @transform_3, window_bounds = array<i64: 1, 8, 128>}, {transform_indices = @transform_4, window_bounds = array<i64: 1, 1, 128>}, {transform_indices = @transform_5, window_bounds = array<i64: 1, 32, 128>}, {transform_indices = @transform_6, window_bounds = array<i64: 1, 8, 2, 32>}]} {
    %c1_i32 = arith.constant 1 : i32
    %0 = arith.cmpi eq, %arg0, %c1_i32 : i32
    %c0 = arith.constant 0 : index
    %c0_0 = arith.constant 0 : index
    %1 = vector.load %arg1[%c0, %c0_0] : memref<16x24xbf16, #tpu.memory_space<vmem>>, vector<16x24xbf16>
    %c0_1 = arith.constant 0 : index
    %c0_2 = arith.constant 0 : index
    %c0_3 = arith.constant 0 : index
    %2 = vector.load %arg3[%c0_1, %c0_2, %c0_3] : memref<1x24x128xbf16, #tpu.memory_space<vmem>>, vector<1x24x128xbf16>
    %3 = vector.shape_cast %2 : vector<1x24x128xbf16> to vector<24x128xbf16>
    %cst = arith.constant dense<0.000000e+00> : vector<16x128xf32>
    %4 = tpu.matmul %1, %3, %cst {dimension_numbers = #tpu.dot_dimension_numbers<[1], [0], [0], [1], [0, 0, 1, 1], [], []>} : vector<16x24xbf16>, vector<24x128xbf16>, vector<16x128xf32> -> vector<16x128xf32>
    %c0_4 = arith.constant 0 : index
    %c0_5 = arith.constant 0 : index
    %5 = vector.load %arg2[%c0_4, %c0_5] : memref<16x8xbf16, #tpu.memory_space<vmem>>, vector<16x8xbf16>
    %c0_6 = arith.constant 0 : index
    %c0_7 = arith.constant 0 : index
    %c0_8 = arith.constant 0 : index
    %6 = vector.load %arg4[%c0_6, %c0_7, %c0_8] : memref<1x8x128xbf16, #tpu.memory_space<vmem>>, vector<1x8x128xbf16>
    %7 = vector.shape_cast %6 : vector<1x8x128xbf16> to vector<8x128xbf16>
    %cst_9 = arith.constant dense<0.000000e+00> : vector<16x128xf32>
    %8 = tpu.matmul %5, %7, %cst_9 {dimension_numbers = #tpu.dot_dimension_numbers<[1], [0], [0], [1], [0, 0, 1, 1], [], []>} : vector<16x8xbf16>, vector<8x128xbf16>, vector<16x128xf32> -> vector<16x128xf32>
    %9 = arith.addf %4, %8 : vector<16x128xf32>
    %c0_10 = arith.constant 0 : index
    %c0_11 = arith.constant 0 : index
    %c0_12 = arith.constant 0 : index
    %10 = vector.load %arg5[%c0_10, %c0_11, %c0_12] : memref<1x1x128xf32, #tpu.memory_space<vmem>>, vector<1x1x128xf32>
    %11 = vector.shape_cast %10 : vector<1x1x128xf32> to vector<1x128xf32>
    %12 = vector.broadcast %11 : vector<1x128xf32> to vector<16x128xf32>
    %13 = arith.addf %9, %12 : vector<16x128xf32>
    %c0_13 = arith.constant 0 : index
    %c0_14 = arith.constant 0 : index
    %14 = vector.load %arg8[%c0_13, %c0_14] : memref<16x128xf32, #tpu.memory_space<vmem>>, vector<16x128xf32>
    tpu.vector_store %arg8[%c0_13, %c0_14], %13 {strides = array<i32>} : memref<16x128xf32, #tpu.memory_space<vmem>>, vector<16x128xf32>,
    %c0_15 = arith.constant 0 : index
    %c0_16 = arith.constant 0 : index
    %c0_17 = arith.constant 0 : index
    %15 = vector.load %arg6[%c0_15, %c0_16, %c0_17] : memref<1x32x128xbf16, #tpu.memory_space<vmem>>, vector<1x32x128xbf16>
    %16 = vector.shape_cast %15 : vector<1x32x128xbf16> to vector<32x128xbf16>
    %cst_18 = arith.constant 0.000000e+00 : f32
    %17 = vector.broadcast %cst_18 : f32 to vector<2x32xf32>
    %cst_19 = arith.constant 0.000000e+00 : f32
    %18 = vector.broadcast %cst_19 : f32 to vector<2x32xf32>
    %c0_i32 = arith.constant 0 : i32
    %c8_i32 = arith.constant 8 : i32
    %19 = arith.addi %c0_i32, %c8_i32 : i32
    %c1_i32_20 = arith.constant 1 : i32
    %20:2 = scf.for %arg9 = %c0_i32 to %19 step %c1_i32_20 iter_args(%arg10 = %17, %arg11 = %18) -> (vector<2x32xf32>, vector<2x32xf32>)  : i32 {
      %c7_i32 = arith.constant 7 : i32
      %21 = arith.subi %c7_i32, %arg9 : i32
      %22 = arith.select %0, %21, %arg9 : i32
      %c2_i32 = arith.constant 2 : i32
      %23 = arith.muli %22, %c2_i32 : i32
      %24 = arith.index_cast %23 : i32 to index
      %c0_22 = arith.constant 0 : index
      %25 = vector.load %arg8[%24, %c0_22] : memref<16x128xf32, #tpu.memory_space<vmem>>, vector<2x128xf32>
      %26 = arith.truncf %arg10 : vector<2x32xf32> to vector<2x32xbf16>
      %cst_23 = arith.constant dense<0.000000e+00> : vector<2x128xf32>
      %27 = tpu.matmul %26, %16, %cst_23 {dimension_numbers = #tpu.dot_dimension_numbers<[1], [0], [0], [1], [0, 0, 1, 1], [], []>} : vector<2x32xbf16>, vector<32x128xbf16>, vector<2x128xf32> -> vector<2x128xf32>
      %28 = arith.addf %25, %27 : vector<2x128xf32>
      %29 = vector.extract_strided_slice %28 {offsets = [0, 0], sizes = [2, 32], strides = [1, 1]} : vector<2x128xf32> to vector<2x32xf32>
      %30 = arith.negf %29 : vector<2x32xf32>
      %31 = math.exp %30 : vector<2x32xf32>
      %cst_24 = arith.constant 1.000000e+00 : f32
      %32 = vector.broadcast %cst_24 : f32 to vector<2x32xf32>
      %33 = arith.addf %32, %31 : vector<2x32xf32>
      %34 = arith.divf %32, %33 : vector<2x32xf32>
      %35 = vector.extract_strided_slice %28 {offsets = [0, 32], sizes = [2, 32], strides = [1, 1]} : vector<2x128xf32> to vector<2x32xf32>
      %36 = arith.negf %35 : vector<2x32xf32>
      %37 = math.exp %36 : vector<2x32xf32>
      %cst_25 = arith.constant 1.000000e+00 : f32
      %38 = vector.broadcast %cst_25 : f32 to vector<2x32xf32>
      %39 = arith.addf %38, %37 : vector<2x32xf32>
      %40 = arith.divf %38, %39 : vector<2x32xf32>
      %41 = vector.extract_strided_slice %28 {offsets = [0, 64], sizes = [2, 32], strides = [1, 1]} : vector<2x128xf32> to vector<2x32xf32>
      %42 = math.tanh %41 : vector<2x32xf32>
      %43 = vector.extract_strided_slice %28 {offsets = [0, 96], sizes = [2, 32], strides = [1, 1]} : vector<2x128xf32> to vector<2x32xf32>
      %44 = arith.negf %43 : vector<2x32xf32>
      %45 = math.exp %44 : vector<2x32xf32>
      %cst_26 = arith.constant 1.000000e+00 : f32
      %46 = vector.broadcast %cst_26 : f32 to vector<2x32xf32>
      %47 = arith.addf %46, %45 : vector<2x32xf32>
      %48 = arith.divf %46, %47 : vector<2x32xf32>
      %49 = arith.mulf %40, %arg11 : vector<2x32xf32>
      %50 = arith.mulf %34, %42 : vector<2x32xf32>
      %51 = arith.addf %49, %50 : vector<2x32xf32>
      %52 = math.tanh %51 : vector<2x32xf32>
      %53 = arith.mulf %48, %52 : vector<2x32xf32>
      %54 = arith.truncf %53 : vector<2x32xf32> to vector<2x32xbf16>
      %c0_27 = arith.constant 0 : index
      %55 = arith.index_cast %22 : i32 to index
      %c0_28 = arith.constant 0 : index
      %c0_29 = arith.constant 0 : index
      %56 = vector.load %arg7[%c0_27, %55, %c0_28, %c0_29] : memref<1x8x2x32xbf16, #tpu.memory_space<vmem>>, vector<1x1x2x32xbf16>
      %57 = vector.shape_cast %56 : vector<1x1x2x32xbf16> to vector<2x32xbf16>
      %58 = vector.shape_cast %54 : vector<2x32xbf16> to vector<1x1x2x32xbf16>
      tpu.vector_store %arg7[%c0_27, %55, %c0_28, %c0_29], %58 {strides = array<i32>} : memref<1x8x2x32xbf16, #tpu.memory_space<vmem>>, vector<1x1x2x32xbf16>,
      scf.yield %53, %51 : vector<2x32xf32>, vector<2x32xf32>
    }
    %c8_i32_21 = arith.constant 8 : i32
    return
  }
  func.func @transform_0(%arg0: i32) -> (i32, i32) {
    %c0_i32 = arith.constant 0 : i32
    %c0_i32_0 = arith.constant 0 : i32
    %c0_i32_1 = arith.constant 0 : i32
    return %c0_i32, %c0_i32_0 : i32, i32
  }
  func.func @transform_1(%arg0: i32) -> (i32, i32) {
    %c0_i32 = arith.constant 0 : i32
    %c0_i32_0 = arith.constant 0 : i32
    %c0_i32_1 = arith.constant 0 : i32
    return %c0_i32, %c0_i32_0 : i32, i32
  }
  func.func @transform_2(%arg0: i32) -> (i32, i32, i32) {
    %c0_i32 = arith.constant 0 : i32
    %c0_i32_0 = arith.constant 0 : i32
    %c0_i32_1 = arith.constant 0 : i32
    return %arg0, %c0_i32, %c0_i32_0 : i32, i32, i32
  }
  func.func @transform_3(%arg0: i32) -> (i32, i32, i32) {
    %c0_i32 = arith.constant 0 : i32
    %c0_i32_0 = arith.constant 0 : i32
    %c0_i32_1 = arith.constant 0 : i32
    return %arg0, %c0_i32, %c0_i32_0 : i32, i32, i32
  }
  func.func @transform_4(%arg0: i32) -> (i32, i32, i32) {
    %c0_i32 = arith.constant 0 : i32
    %c0_i32_0 = arith.constant 0 : i32
    %c0_i32_1 = arith.constant 0 : i32
    return %arg0, %c0_i32, %c0_i32_0 : i32, i32, i32
  }
  func.func @transform_5(%arg0: i32) -> (i32, i32, i32) {
    %c0_i32 = arith.constant 0 : i32
    %c0_i32_0 = arith.constant 0 : i32
    %c0_i32_1 = arith.constant 0 : i32
    return %arg0, %c0_i32, %c0_i32_0 : i32, i32, i32
  }
  func.func @transform_6(%arg0: i32) -> (i32, i32, i32, i32) {
    %c0_i32 = arith.constant 0 : i32
    %c0_i32_0 = arith.constant 0 : i32
    %c0_i32_1 = arith.constant 0 : i32
    %c0_i32_2 = arith.constant 0 : i32
    return %arg0, %c0_i32, %c0_i32_0, %c0_i32_1 : i32, i32, i32, i32
  }
}

module attributes {stable_mosaic.version = 11 : i64} {
  func.func @_head_kernel(%arg0: i32, %arg1: memref<16x32xbf16, #tpu.memory_space<vmem>>, %arg2: memref<16x32xbf16, #tpu.memory_space<vmem>>, %arg3: memref<32x64xbf16, #tpu.memory_space<vmem>>, %arg4: memref<32x64xbf16, #tpu.memory_space<vmem>>, %arg5: memref<1x64xf32, #tpu.memory_space<vmem>>, %arg6: memref<64x6xbf16, #tpu.memory_space<vmem>>, %arg7: memref<1x6xf32, #tpu.memory_space<vmem>>, %arg8: memref<16x6xf32, #tpu.memory_space<vmem>>) attributes {dimension_semantics = [#tpu.dimension_semantics<parallel>], iteration_bounds = array<i64: 1>, scalar_prefetch = 0 : i64, scratch_operands = 0 : i64, tpu.core_type = #tpu.core_type<tc>, window_params = [{transform_indices = @transform_0, window_bounds = array<i64: 16, 32>}, {transform_indices = @transform_1, window_bounds = array<i64: 16, 32>}, {pipeline_mode = #tpu.pipeline_mode<synchronous>, transform_indices = @transform_2, window_bounds = array<i64: 32, 64>}, {pipeline_mode = #tpu.pipeline_mode<synchronous>, transform_indices = @transform_3, window_bounds = array<i64: 32, 64>}, {pipeline_mode = #tpu.pipeline_mode<synchronous>, transform_indices = @transform_4, window_bounds = array<i64: 1, 64>}, {pipeline_mode = #tpu.pipeline_mode<synchronous>, transform_indices = @transform_5, window_bounds = array<i64: 64, 6>}, {pipeline_mode = #tpu.pipeline_mode<synchronous>, transform_indices = @transform_6, window_bounds = array<i64: 1, 6>}, {transform_indices = @transform_7, window_bounds = array<i64: 16, 6>}]} {
    %c0 = arith.constant 0 : index
    %c0_0 = arith.constant 0 : index
    %0 = vector.load %arg1[%c0, %c0_0] : memref<16x32xbf16, #tpu.memory_space<vmem>>, vector<16x32xbf16>
    %c0_1 = arith.constant 0 : index
    %c0_2 = arith.constant 0 : index
    %1 = vector.load %arg3[%c0_1, %c0_2] : memref<32x64xbf16, #tpu.memory_space<vmem>>, vector<32x64xbf16>
    %cst = arith.constant dense<0.000000e+00> : vector<16x64xf32>
    %2 = tpu.matmul %0, %1, %cst {dimension_numbers = #tpu.dot_dimension_numbers<[1], [0], [0], [1], [0, 0, 1, 1], [], []>} : vector<16x32xbf16>, vector<32x64xbf16>, vector<16x64xf32> -> vector<16x64xf32>
    %c0_3 = arith.constant 0 : index
    %c0_4 = arith.constant 0 : index
    %3 = vector.load %arg2[%c0_3, %c0_4] : memref<16x32xbf16, #tpu.memory_space<vmem>>, vector<16x32xbf16>
    %c0_5 = arith.constant 0 : index
    %c0_6 = arith.constant 0 : index
    %4 = vector.load %arg4[%c0_5, %c0_6] : memref<32x64xbf16, #tpu.memory_space<vmem>>, vector<32x64xbf16>
    %cst_7 = arith.constant dense<0.000000e+00> : vector<16x64xf32>
    %5 = tpu.matmul %3, %4, %cst_7 {dimension_numbers = #tpu.dot_dimension_numbers<[1], [0], [0], [1], [0, 0, 1, 1], [], []>} : vector<16x32xbf16>, vector<32x64xbf16>, vector<16x64xf32> -> vector<16x64xf32>
    %6 = arith.addf %2, %5 : vector<16x64xf32>
    %c0_8 = arith.constant 0 : index
    %c0_9 = arith.constant 0 : index
    %7 = vector.load %arg5[%c0_8, %c0_9] : memref<1x64xf32, #tpu.memory_space<vmem>>, vector<1x64xf32>
    %8 = vector.broadcast %7 : vector<1x64xf32> to vector<16x64xf32>
    %9 = arith.addf %6, %8 : vector<16x64xf32>
    %10 = arith.truncf %9 : vector<16x64xf32> to vector<16x64xbf16>
    %c0_10 = arith.constant 0 : index
    %c0_11 = arith.constant 0 : index
    %11 = vector.load %arg6[%c0_10, %c0_11] : memref<64x6xbf16, #tpu.memory_space<vmem>>, vector<64x6xbf16>
    %cst_12 = arith.constant dense<0.000000e+00> : vector<16x6xf32>
    %12 = tpu.matmul %10, %11, %cst_12 {dimension_numbers = #tpu.dot_dimension_numbers<[1], [0], [0], [1], [0, 0, 1, 1], [], []>} : vector<16x64xbf16>, vector<64x6xbf16>, vector<16x6xf32> -> vector<16x6xf32>
    %c0_13 = arith.constant 0 : index
    %c0_14 = arith.constant 0 : index
    %13 = vector.load %arg7[%c0_13, %c0_14] : memref<1x6xf32, #tpu.memory_space<vmem>>, vector<1x6xf32>
    %14 = vector.broadcast %13 : vector<1x6xf32> to vector<16x6xf32>
    %15 = arith.addf %12, %14 : vector<16x6xf32>
    %cst_15 = arith.constant dense<0xFF800000> : vector<16xf32>
    %16 = vector.multi_reduction <maximumf>, %15, %cst_15 [1] : vector<16x6xf32> to vector<16xf32>
    %17 = vector.shape_cast %16 : vector<16xf32> to vector<16x1xf32>
    %18 = vector.broadcast %17 : vector<16x1xf32> to vector<16x6xf32>
    %19 = arith.subf %15, %18 : vector<16x6xf32>
    %20 = math.exp %19 : vector<16x6xf32>
    %cst_16 = arith.constant dense<0.000000e+00> : vector<16xf32>
    %21 = vector.multi_reduction <add>, %20, %cst_16 [1] : vector<16x6xf32> to vector<16xf32>
    %22 = vector.shape_cast %21 : vector<16xf32> to vector<16x1xf32>
    %23 = math.log %22 : vector<16x1xf32>
    %24 = vector.broadcast %23 : vector<16x1xf32> to vector<16x6xf32>
    %25 = arith.subf %19, %24 : vector<16x6xf32>
    %c0_17 = arith.constant 0 : index
    %c0_18 = arith.constant 0 : index
    %26 = vector.load %arg8[%c0_17, %c0_18] : memref<16x6xf32, #tpu.memory_space<vmem>>, vector<16x6xf32>
    tpu.vector_store %arg8[%c0_17, %c0_18], %25 {strides = array<i32>} : memref<16x6xf32, #tpu.memory_space<vmem>>, vector<16x6xf32>,
    return
  }
  func.func @transform_0(%arg0: i32) -> (i32, i32) {
    %c0_i32 = arith.constant 0 : i32
    %c0_i32_0 = arith.constant 0 : i32
    return %arg0, %c0_i32 : i32, i32
  }
  func.func @transform_1(%arg0: i32) -> (i32, i32) {
    %c0_i32 = arith.constant 0 : i32
    %c0_i32_0 = arith.constant 0 : i32
    return %arg0, %c0_i32 : i32, i32
  }
  func.func @transform_2(%arg0: i32) -> (i32, i32) {
    %c0_i32 = arith.constant 0 : i32
    %c0_i32_0 = arith.constant 0 : i32
    %c0_i32_1 = arith.constant 0 : i32
    return %c0_i32, %c0_i32_0 : i32, i32
  }
  func.func @transform_3(%arg0: i32) -> (i32, i32) {
    %c0_i32 = arith.constant 0 : i32
    %c0_i32_0 = arith.constant 0 : i32
    %c0_i32_1 = arith.constant 0 : i32
    return %c0_i32, %c0_i32_0 : i32, i32
  }
  func.func @transform_4(%arg0: i32) -> (i32, i32) {
    %c0_i32 = arith.constant 0 : i32
    %c0_i32_0 = arith.constant 0 : i32
    %c0_i32_1 = arith.constant 0 : i32
    return %c0_i32, %c0_i32_0 : i32, i32
  }
  func.func @transform_5(%arg0: i32) -> (i32, i32) {
    %c0_i32 = arith.constant 0 : i32
    %c0_i32_0 = arith.constant 0 : i32
    %c0_i32_1 = arith.constant 0 : i32
    return %c0_i32, %c0_i32_0 : i32, i32
  }
  func.func @transform_6(%arg0: i32) -> (i32, i32) {
    %c0_i32 = arith.constant 0 : i32
    %c0_i32_0 = arith.constant 0 : i32
    %c0_i32_1 = arith.constant 0 : i32
    return %c0_i32, %c0_i32_0 : i32, i32
  }
  func.func @transform_7(%arg0: i32) -> (i32, i32) {
    %c0_i32 = arith.constant 0 : i32
    %c0_i32_0 = arith.constant 0 : i32
    return %arg0, %c0_i32 : i32, i32
  }
}

</mosaic_0001>

<llo_original>
// kernel: net_forward.2
$region0: #{net_forward.2}
  #allocation0 [shape = 'u32[]', space=smem, size = 0x4, offset = 0x4, fixed_abs, tag = 'smem constant byte address 0x4 - core index']
  #allocation1 [shape = 'u32[144,128]{1,0:T(1,128)}', space=vmem, size = 0x12000, scoped, tag = 'internal scratch']
  #allocation2 [shape = 'f32[16,128]{1,0:T(8,128)}', space=vmem, size = 0x2000, scoped, tag = 'scratch operand']
  %s0 = inlined_call_operand.vmem [shape: bf16[16,24], index: 0, kind: input, shape index: {}]
  %s1 = inlined_call_operand.vmem [shape: bf16[16,8], index: 1, kind: input, shape index: {}]
  %s2 = inlined_call_operand.vmem [shape: bf16[2,24,128], index: 2, kind: input, shape index: {}]
  %s3 = inlined_call_operand.vmem [shape: bf16[2,8,128], index: 3, kind: input, shape index: {}]
  %s4 = inlined_call_operand.vmem [shape: f32[2,1,128], index: 4, kind: input, shape index: {}]
  %s5 = inlined_call_operand.vmem [shape: bf16[2,32,128], index: 5, kind: input, shape index: {}]
  %s6 = inlined_call_operand.vmem [shape: bf16[2,8,2,32], index: 6, kind: output, shape index: {}]
  %s7 = sld [smem:[#allocation0]]
  $region64: #{net_forward.2} parent=0
    _
  %s9 = ssub.s32 1, %s7
  %s10 = scalar_select 0, %s9, %s7
  loop: start=0, step=1, limit=4
  $region2: #{net_forward.2} parent=0 // loop_pre_header
    _
  $region3: #{net_forward.2} parent=0 // loop_header
    %s12 = sphi 0, %s16
    %p13 = scmp.ge.s32.totalorder %s12, 4
    %s20 = sphi 0, %s20
    %s22 = sphi 0, %s20
    %s23 = sphi 0, %s22
    %s37 = sphi 0, %s23
    %s41 = sphi 0, %s41
    %s43 = sphi 0, %s41
    %s44 = sphi 0, %s43
    %s58 = sphi 0, %s44
    %s64 = sphi 0, %s66
    %s67 = sphi 0, %s64
    %s68 = sphi 0, %s67
    %s84 = sphi 0, %s68
    %s90 = sphi 0, %s92
    %s93 = sphi 0, %s90
    %s94 = sphi 0, %s93
    %s110 = sphi 0, %s94
    %s116 = sphi 0, %s118
    %s119 = sphi 0, %s116
    %s120 = sphi 0, %s119
    %s136 = sphi 0, %s120
    %s142 = sphi 0, %s144
    %s145 = sphi 0, %s142
    %s146 = sphi 0, %s145
    %s162 = sphi 0, %s146
    %s168 = sphi 0, %s170
    %s171 = sphi 0, %s168
    %s172 = sphi 0, %s171
    %s188 = sphi 0, %s172
  $region4: #{net_forward.2} parent=0 // loop_header_branch
    %15 = sbr.rel (%p13) target = $region8
  $region5: #{net_forward.2} parent=0 // loop_body
    %s17 = ssub.s32 %s12, 1
    %s18 = ssub.s32 %s12, 2
    %s19 = sadd.s32 %s12, 1
    %s21 = sadd.s32 %s20, 1
    %p24 = scmp.eq.s32.totalorder %s12, 1
    %p25 = scmp.ne.s32.totalorder %s20, %s22
    %p26 = scmp.eq.s32.totalorder %s12, 0
    %p27 = por %p25, %p26
    %p28 = scmp.ne.s32.totalorder %s20, %s22
    %p29 = scmp.eq.s32.totalorder %s17, 1
    %p30 = por %p28, %p29
    %p31 = scmp.ne.s32.totalorder %s22, %s23
    %p32 = scmp.eq.s32.totalorder %s17, 0
    %p33 = por %p31, %p32
    %p34 = scmp.ne.s32.totalorder %s22, %s23
    %p35 = scmp.eq.s32.totalorder %s18, 1
    %p36 = por %p34, %p35
    %p38 = scmp.ne.s32.totalorder %s23, %s37
    %p39 = scmp.eq.s32.totalorder %s18, 0
    %p40 = por %p38, %p39
    %s42 = sadd.s32 %s41, 1
    %p45 = scmp.eq.s32.totalorder %s12, 1
    %p46 = scmp.ne.s32.totalorder %s41, %s43
    %p47 = scmp.eq.s32.totalorder %s12, 0
    %p48 = por %p46, %p47
    %p49 = scmp.ne.s32.totalorder %s41, %s43
    %p50 = scmp.eq.s32.totalorder %s17, 1
    %p51 = por %p49, %p50
    %p52 = scmp.ne.s32.totalorder %s43, %s44
    %p53 = scmp.eq.s32.totalorder %s17, 0
    %p54 = por %p52, %p53
    %p55 = scmp.ne.s32.totalorder %s43, %s44
    %p56 = scmp.eq.s32.totalorder %s18, 1
    %p57 = por %p55, %p56
    %p59 = scmp.ne.s32.totalorder %s44, %s58
    %p60 = scmp.eq.s32.totalorder %s18, 0
    %p61 = por %p59, %p60
    %s62 = ssub.s32 %s12, %s19
    %p63 = scmp.eq.s32.totalorder %s62, 0
    %s65 = sadd.s32 %s64, 1
    %s66 = scalar_select %p63, %s64, %s65
    %p69 = pneg %p63
    %p70 = scmp.eq.s32.totalorder %s12, 1
    %p71 = por %p69, %p70
    %p72 = scmp.ne.s32.totalorder %s64, %s67
    %p73 = scmp.eq.s32.totalorder %s12, 0
    %p74 = por %p72, %p73
    %p75 = scmp.ne.s32.totalorder %s64, %s67
    %p76 = scmp.eq.s32.totalorder %s17, 1
    %p77 = por %p75, %p76
    %p78 = scmp.ne.s32.totalorder %s67, %s68
    %p79 = scmp.eq.s32.totalorder %s17, 0
    %p80 = por %p78, %p79
    %p81 = scmp.ne.s32.totalorder %s67, %s68
    %p82 = scmp.eq.s32.totalorder %s18, 1
    %p83 = por %p81, %p82
    %p85 = scmp.ne.s32.totalorder %s68, %s84
    %p86 = scmp.eq.s32.totalorder %s18, 0
    %p87 = por %p85, %p86
    %s88 = ssub.s32 %s12, %s19
    %p89 = scmp.eq.s32.totalorder %s88, 0
    %s91 = sadd.s32 %s90, 1
    %s92 = scalar_select %p89, %s90, %s91
    %p95 = pneg %p89
    %p96 = scmp.eq.s32.totalorder %s12, 1
    %p97 = por %p95, %p96
    %p98 = scmp.ne.s32.totalorder %s90, %s93
    %p99 = scmp.eq.s32.totalorder %s12, 0
    %p100 = por %p98, %p99
    %p101 = scmp.ne.s32.totalorder %s90, %s93
    %p102 = scmp.eq.s32.totalorder %s17, 1
    %p103 = por %p101, %p102
    %p104 = scmp.ne.s32.totalorder %s93, %s94
    %p105 = scmp.eq.s32.totalorder %s17, 0
    %p106 = por %p104, %p105
    %p107 = scmp.ne.s32.totalorder %s93, %s94
    %p108 = scmp.eq.s32.totalorder %s18, 1
    %p109 = por %p107, %p108
    %p111 = scmp.ne.s32.totalorder %s94, %s110
    %p112 = scmp.eq.s32.totalorder %s18, 0
    %p113 = por %p111, %p112
    %s114 = ssub.s32 %s12, %s19
    %p115 = scmp.eq.s32.totalorder %s114, 0
    %s117 = sadd.s32 %s116, 1
    %s118 = scalar_select %p115, %s116, %s117
    %p121 = pneg %p115
    %p122 = scmp.eq.s32.totalorder %s12, 1
    %p123 = por %p121, %p122
    %p124 = scmp.ne.s32.totalorder %s116, %s119
    %p125 = scmp.eq.s32.totalorder %s12, 0
    %p126 = por %p124, %p125
    %p127 = scmp.ne.s32.totalorder %s116, %s119
    %p128 = scmp.eq.s32.totalorder %s17, 1
    %p129 = por %p127, %p128
    %p130 = scmp.ne.s32.totalorder %s119, %s120
    %p131 = scmp.eq.s32.totalorder %s17, 0
    %p132 = por %p130, %p131
    %p133 = scmp.ne.s32.totalorder %s119, %s120
    %p134 = scmp.eq.s32.totalorder %s18, 1
    %p135 = por %p133, %p134
    %p137 = scmp.ne.s32.totalorder %s120, %s136
    %p138 = scmp.eq.s32.totalorder %s18, 0
    %p139 = por %p137, %p138
    %s140 = ssub.s32 %s12, %s19
    %p141 = scmp.eq.s32.totalorder %s140, 0
    %s143 = sadd.s32 %s142, 1
    %s144 = scalar_select %p141, %s142, %s143
    %p147 = pneg %p141
    %p148 = scmp.eq.s32.totalorder %s12, 1
    %p149 = por %p147, %p148
    %p150 = scmp.ne.s32.totalorder %s142, %s145
    %p151 = scmp.eq.s32.totalorder %s12, 0
    %p152 = por %p150, %p151
    %p153 = scmp.ne.s32.totalorder %s142, %s145
    %p154 = scmp.eq.s32.totalorder %s17, 1
    %p155 = por %p153, %p154
    %p156 = scmp.ne.s32.totalorder %s145, %s146
    %p157 = scmp.eq.s32.totalorder %s17, 0
    %p158 = por %p156, %p157
    %p159 = scmp.ne.s32.totalorder %s145, %s146
    %p160 = scmp.eq.s32.totalorder %s18, 1
    %p161 = por %p159, %p160
    %p163 = scmp.ne.s32.totalorder %s146, %s162
    %p164 = scmp.eq.s32.totalorder %s18, 0
    %p165 = por %p163, %p164
    %s166 = ssub.s32 %s12, %s19
    %p167 = scmp.eq.s32.totalorder %s166, 0
    %s169 = sadd.s32 %s168, 1
    %s170 = scalar_select %p167, %s168, %s169
    %p173 = pneg %p167
    %p174 = scmp.eq.s32.totalorder %s12, 1
    %p175 = por %p173, %p174
    %p176 = scmp.ne.s32.totalorder %s168, %s171
    %p177 = scmp.eq.s32.totalorder %s12, 0
    %p178 = por %p176, %p177
    %p179 = scmp.ne.s32.totalorder %s168, %s171
    %p180 = scmp.eq.s32.totalorder %s17, 1
    %p181 = por %p179, %p180
    %p182 = scmp.ne.s32.totalorder %s171, %s172
    %p183 = scmp.eq.s32.totalorder %s17, 0
    %p184 = por %p182, %p183
    %p185 = scmp.ne.s32.totalorder %s171, %s172
    %p186 = scmp.eq.s32.totalorder %s18, 1
    %p187 = por %p185, %p186
    %p189 = scmp.ne.s32.totalorder %s172, %s188
    %p190 = scmp.eq.s32.totalorder %s18, 0
    %p191 = por %p189, %p190
    %p192 = scmp.le.s32.totalorder 1, %s12
    %p193 = scmp.lt.s32.totalorder %s12, 3
    %p194 = pnand %p192, %p193
    %p195 = pneg %p194
    // Predicated region
    $region9: #{net_forward.2} parent=5 // pred_check
      _
    $region10: #{net_forward.2} parent=5 // pred_check_branch
      %197 = sbr.rel (%p194) target = $region12
    $region11: #{net_forward.2} parent=5 // pred_region
      %s198 = ssub.s32 %s12, 1
      // Predicated region
      $region13: #{net_forward.2} parent=11 // pred_check
        %p199 = pneg %p33
      $region14: #{net_forward.2} parent=11 // pred_check_branch
        %201 = sbr.rel (%p199) target = $region16
      $region15: #{net_forward.2} parent=11 // pred_region
        _
      $region16: #{net_forward.2} parent=11 // pred_fallthru
        _
      // Predicated region
      $region17: #{net_forward.2} parent=11 // pred_check
        %p202 = pneg %p54
      $region18: #{net_forward.2} parent=11 // pred_check_branch
        %204 = sbr.rel (%p202) target = $region20
      $region19: #{net_forward.2} parent=11 // pred_region
        _
      $region20: #{net_forward.2} parent=11 // pred_fallthru
        _
    $region12: #{net_forward.2} parent=5 // pred_fallthru
      _
    %p205 = scmp.lt.s32.totalorder %s12, 2
    // Predicated region
    $region21: #{net_forward.2} parent=5 // pred_check
      %p206 = pneg %p205
    $region22: #{net_forward.2} parent=5 // pred_check_branch
      %208 = sbr.rel (%p206) target = $region24
    $region23: #{net_forward.2} parent=5 // pred_region
      // Predicated region
      $region25: #{net_forward.2} parent=23 // pred_check
        %p209 = pneg %p74
      $region26: #{net_forward.2} parent=23 // pred_check_branch
        %211 = sbr.rel (%p209) target = $region28
      $region27: #{net_forward.2} parent=23 // pred_region
        %p212 = scmp.lt.s32.totalorder %s12, 1
        %s213 = scalar_select %p212, %s12, 1
        %s214 = smul.addr %s213, 3
        %s215 = smul.addr %s214, 4
        %s216 = scalar_lea.vmem %s2, %s215
      $region28: #{net_forward.2} parent=23 // pred_fallthru
        _
      // Predicated region
      $region29: #{net_forward.2} parent=23 // pred_check
        %p217 = pneg %p100
      $region30: #{net_forward.2} parent=23 // pred_check_branch
        %219 = sbr.rel (%p217) target = $region32
      $region31: #{net_forward.2} parent=23 // pred_region
        %p220 = scmp.lt.s32.totalorder %s12, 1
        %s221 = scalar_select %p220, %s12, 1
        %s222 = smul.addr %s221, 4
        %s223 = scalar_lea.vmem %s3, %s222
      $region32: #{net_forward.2} parent=23 // pred_fallthru
        _
      // Predicated region
      $region33: #{net_forward.2} parent=23 // pred_check
        %p224 = pneg %p126
      $region34: #{net_forward.2} parent=23 // pred_check_branch
        %226 = sbr.rel (%p224) target = $region36
      $region35: #{net_forward.2} parent=23 // pred_region
        %p227 = scmp.lt.s32.totalorder %s12, 1
        %s228 = scalar_select %p227, %s12, 1
        %s229 = scalar_lea.vmem %s4, %s228
      $region36: #{net_forward.2} parent=23 // pred_fallthru
        _
      // Predicated region
      $region37: #{net_forward.2} parent=23 // pred_check
        %p230 = pneg %p152
      $region38: #{net_forward.2} parent=23 // pred_check_branch
        %232 = sbr.rel (%p230) target = $region40
      $region39: #{net_forward.2} parent=23 // pred_region
        %p233 = scmp.lt.s32.totalorder %s12, 1
        %s234 = scalar_select %p233, %s12, 1
        %s235 = smul.addr %s234, 4
        %s236 = smul.addr %s235, 4
        %s237 = scalar_lea.vmem %s5, %s236
      $region40: #{net_forward.2} parent=23 // pred_fallthru
        _
    $region24: #{net_forward.2} parent=5 // pred_fallthru
      _
    %p238 = scmp.le.s32.totalorder 1, %s12
    %p239 = scmp.lt.s32.totalorder %s12, 3
    %p240 = pnand %p238, %p239
    %p241 = pneg %p240
    // Predicated region
    $region41: #{net_forward.2} parent=5 // pred_check
      _
    $region42: #{net_forward.2} parent=5 // pred_check_branch
      %243 = sbr.rel (%p240) target = $region44
    $region43: #{net_forward.2} parent=5 // pred_region
      %s244 = ssub.s32 %s12, 1
      %p245 = pneg %p33
      %p246 = pneg %p30
      %p247 = pneg %p54
      %p248 = pneg %p51
      %p249 = scmp.lt.s32.totalorder %s17, 1
      %s250 = scalar_select %p249, %s17, 1
      %s251 = smul.addr %s250, 3
      %s252 = smul.addr %s251, 4
      %s253 = scalar_lea.vmem %s2, %s252
      %p254 = pneg %p80
      %p255 = pneg %p77
      %p256 = scmp.lt.s32.totalorder %s17, 1
      %s257 = scalar_select %p256, %s17, 1
      %s258 = smul.addr %s257, 4
      %s259 = scalar_lea.vmem %s3, %s258
      %p260 = pneg %p106
      %p261 = pneg %p103
      %p262 = scmp.lt.s32.totalorder %s17, 1
      %s263 = scalar_select %p262, %s17, 1
      %s264 = scalar_lea.vmem %s4, %s263
      %p265 = pneg %p132
      %p266 = pneg %p129
      %p267 = scmp.lt.s32.totalorder %s17, 1
      %s268 = scalar_select %p267, %s17, 1
      %s269 = smul.addr %s268, 4
      %s270 = smul.addr %s269, 4
      %s271 = scalar_lea.vmem %s5, %s270
      %p272 = pneg %p158
      %p273 = pneg %p155
      %p274 = pneg %p184
      %p275 = pneg %p181
      %p276 = scmp.lt.s32.totalorder %s17, 1
      %s277 = scalar_select %p276, %s17, 1
      %s278 = smul.addr %s277, 8
      %s279 = scalar_lea.vmem %s6, %s278
      %p280 = scmp.lt.s32.totalorder %s17, 1
      %s281 = scalar_select %p280, %s17, 1
      %s282 = smul.addr %s281, 3
      %s283 = smul.addr %s282, 4
      %s284 = scalar_lea.vmem %s2, %s283
      %p285 = scmp.lt.s32.totalorder %s17, 1
      %s286 = scalar_select %p285, %s17, 1
      %s287 = smul.addr %s286, 4
      %s288 = scalar_lea.vmem %s3, %s287
      %p289 = scmp.lt.s32.totalorder %s17, 1
      %s290 = scalar_select %p289, %s17, 1
      %s291 = scalar_lea.vmem %s4, %s290
      %p292 = scmp.lt.s32.totalorder %s17, 1
      %s293 = scalar_select %p292, %s17, 1
      %s294 = smul.addr %s293, 4
      %s295 = smul.addr %s294, 4
      %s296 = scalar_lea.vmem %s5, %s295
      %p297 = scmp.lt.s32.totalorder %s17, 1
      %s298 = scalar_select %p297, %s17, 1
      %s299 = smul.addr %s298, 8
      %s300 = scalar_lea.vmem %s6, %s299
      %p302 = scmp.eq.s32.totalorder %s17, 1
      %v303 = vld [vmem:[%s0] sm:$0xf]
      %v304 = vld [vmem:[%s0 + $0x4] sm:$0xf]
      %v305 = vld [vmem:[%s284] sm:$0xf]
      %v306 = vld [vmem:[%s284 + $0x4] sm:$0xf]
      %v307 = vld [vmem:[%s284 + $0x8] sm:$0xf]
      %v308 = vld [vmem:[%s1] sm:$0xf]
      %v309 = vld [vmem:[%s1 + $0x4] sm:$0xf]
      %v310 = vld [vmem:[%s288] sm:$0xf]
      %v313 = vunpack.c.l.b16 %v308
      %v314 = vunpack.c.l.b16 %v309
      %v315 = vpack.c.b16 %v314, %v313
      %vm316 = vcmask 64512
      %v318 = vsel %vm316, %v315, 0
      %vm320 = vcmask 1043456
      %v322 = vsel %vm320, %v310, 0
      %324 = vmatprep.subr.bf16.mxu0 0
      %325 = vmatpush1.bf16.msra.mxu0 %v322
      %326 = vmatprep.subr.bf16.mxu0 0
      %327 = vmatpush1.bf16.msra.mxu0 0
      %328 = vmatprep.subr.bf16.mxu0 0
      %329 = vmatpush1.bf16.msra.mxu0 0
      %330 = vmatprep.subr.bf16.mxu0 0
      %331 = vmatpush1.bf16.msra.mxu0 0
      %332 = vmatprep.subr.bf16.mxu0 0
      %333 = vmatpush1.bf16.msra.mxu0 0
      %334 = vmatprep.subr.bf16.mxu0 0
      %335 = vmatpush1.bf16.msra.mxu0 0
      %336 = vmatprep.subr.bf16.mxu0 0
      %337 = vmatpush1.bf16.msra.mxu0 0
      %338 = vmatprep.subr.bf16.mxu0 0
      %339 = vmatpush1.bf16.msra.mxu0 0
      %340 = vmatprep.subr.bf16.mxu0 0
      %341 = vmatpush1.bf16.msra.mxu0 0
      %342 = vmatprep.subr.bf16.mxu0 0
      %343 = vmatpush1.bf16.msra.mxu0 0
      %344 = vmatprep.subr.bf16.mxu0 0
      %345 = vmatpush1.bf16.msra.mxu0 0
      %346 = vmatprep.subr.bf16.mxu0 0
      %347 = vmatpush1.bf16.msra.mxu0 0
      %348 = vmatprep.subr.bf16.mxu0 0
      %349 = vmatpush1.bf16.msra.mxu0 0
      %350 = vmatprep.subr.bf16.mxu0 0
      %351 = vmatpush1.bf16.msra.mxu0 0
      %352 = vmatprep.subr.bf16.mxu0 0
      %353 = vmatpush1.bf16.msra.mxu0 0
      %354 = vmatprep.subr.bf16.mxu0 0
      %355 = vmatpush1.bf16.msra.mxu0 0
      %356 = vmatprep.mubr.bf16.mxu0 0
      %357 = vmatmul.mubr.bf16.gmra.mrb[0].mxu0 %v318
      %v358 = vpop.f32.mrb[0].mxu0
      %v359 = vadd.f32 0.0, %v358
      %v360 = vpop.f32.mrb[0].mxu0
      %v361 = vpop.f32.mrb[0].mxu0
      %v362 = vadd.f32 0.0, %v361
      %v363 = vpop.f32.mrb[0].mxu0
      %364 = vdwg.mxu0
      %v367 = vunpack.c.l.b16 %v303
      %v368 = vunpack.c.l.b16 %v304
      %v369 = vpack.c.b16 %v368, %v367
      %v373 = vunpack.c.l.b16 %v305
      %v374 = vunpack.c.l.b16 %v306
      %v375 = vunpack.c.l.b16 %v307
      %v376 = vpack.c.b16 %v374, %v373
      %v377 = vpack.c.b16 %v375, %v375
      %vm379 = vcmask 195584
      %v381 = vsel %vm379, %v369, 0
      %v384 = vsel %vm320, %v377, 0
      %386 = vmatprep.subr.bf16.mxu0 0
      %387 = vmatpush1.bf16.msra.mxu0 %v376
      %388 = vmatprep.subr.bf16.mxu0 0
      %389 = vmatpush1.bf16.msra.mxu0 %v384
      %390 = vmatprep.subr.bf16.mxu0 0
      %391 = vmatpush1.bf16.msra.mxu0 0
      %392 = vmatprep.subr.bf16.mxu0 0
      %393 = vmatpush1.bf16.msra.mxu0 0
      %394 = vmatprep.subr.bf16.mxu0 0
      %395 = vmatpush1.bf16.msra.mxu0 0
      %396 = vmatprep.subr.bf16.mxu0 0
      %397 = vmatpush1.bf16.msra.mxu0 0
      %398 = vmatprep.subr.bf16.mxu0 0
      %399 = vmatpush1.bf16.msra.mxu0 0
      %400 = vmatprep.subr.bf16.mxu0 0
      %401 = vmatpush1.bf16.msra.mxu0 0
      %402 = vmatprep.subr.bf16.mxu0 0
      %403 = vmatpush1.bf16.msra.mxu0 0
      %404 = vmatprep.subr.bf16.mxu0 0
      %405 = vmatpush1.bf16.msra.mxu0 0
      %406 = vmatprep.subr.bf16.mxu0 0
      %407 = vmatpush1.bf16.msra.mxu0 0
      %408 = vmatprep.subr.bf16.mxu0 0
      %409 = vmatpush1.bf16.msra.mxu0 0
      %410 = vmatprep.subr.bf16.mxu0 0
      %411 = vmatpush1.bf16.msra.mxu0 0
      %412 = vmatprep.subr.bf16.mxu0 0
      %413 = vmatpush1.bf16.msra.mxu0 0
      %414 = vmatprep.subr.bf16.mxu0 0
      %415 = vmatpush1.bf16.msra.mxu0 0
      %416 = vmatprep.subr.bf16.mxu0 0
      %417 = vmatpush1.bf16.msra.mxu0 0
      %418 = vmatprep.mubr.bf16.mxu0 0
      %419 = vmatmul.mubr.bf16.gmra.mrb[0].mxu0 %v381
      %v420 = vpop.f32.mrb[0].mxu0
      %v421 = vadd.f32 %v359, %v420
      %v422 = vpop.f32.mrb[0].mxu0
      %v423 = vpop.f32.mrb[0].mxu0
      %v424 = vadd.f32 %v362, %v423
      %v425 = vpop.f32.mrb[0].mxu0
      %426 = vdwg.mxu0
      %v427 = vld [vmem:[%s291] sm:$0x1]
      %v429 = vlaneseq
      %v430 = vshrl.u32 %v429, 7
      %v431 = vsub.s32 0, %v430
      %v432 = vrot.slane %v427, %v431
      %v434 = vadd.f32 %v421, %v432
      %v435 = vadd.f32 %v424, %v432
      %436 = vst [vmem:[#allocation2] sm:$0xff] %v434
      %437 = vst [vmem:[#allocation2 + $0x8] sm:$0xff] %v435
      %v438 = vld [vmem:[%s296] sm:$0xf]
      %v439 = vld [vmem:[%s296 + $0x4] sm:$0xf]
      %v440 = vld [vmem:[%s296 + $0x8] sm:$0xf]
      %v441 = vld [vmem:[%s296 + $0xc] sm:$0xf]
      loop: start=0, step=1, limit=8
      $region45: #{net_forward.2} parent=43 // loop_pre_header
        _
      $region46: #{net_forward.2} parent=43 // loop_header
        %s443 = sphi 0, %s447
        %p444 = scmp.ge.s32.totalorder %s443, 8
        %v448 = vphi 0.0, %v539
        %v449 = vphi 0.0, %v533
      $region47: #{net_forward.2} parent=43 // loop_header_branch
        %446 = sbr.rel (%p444) target = $region51
      $region48: #{net_forward.2} parent=43 // loop_body
        %s450 = ssub.s32 7, %s443
        %s451 = scalar_select %p302, %s450, %s443
        %s452 = smul.u32 %s451, 2
        %s453 = scalar_lea.vmem [#allocation2], %s452
        %v454 = vld [vmem:[%s453] sm:$0x3]
        %v455 = vpack.c.bf16 %v448, %v448
        %457 = vrot.lane.b32.xlu0 %v455, 32
        %v458 = vpop.permute.xlu0 %457
        %v463 = vunpack.c.l.b16 %v438
        %v464 = vunpack.c.l.b16 %v439
        %v465 = vunpack.c.l.b16 %v440
        %v466 = vunpack.c.l.b16 %v441
        %v467 = vpack.c.b16 %v464, %v463
        %v468 = vpack.c.b16 %v466, %v465
        %vm471 = vcmask 261120
        %v473 = vsel %vm471, %v458, 0
        %475 = vmatprep.subr.bf16.mxu0 0
        %476 = vmatpush1.bf16.msra.mxu0 %v467
        %477 = vmatprep.subr.bf16.mxu0 0
        %478 = vmatpush1.bf16.msra.mxu0 %v468
        %479 = vmatprep.subr.bf16.mxu0 0
        %480 = vmatpush1.bf16.msra.mxu0 0
        %481 = vmatprep.subr.bf16.mxu0 0
        %482 = vmatpush1.bf16.msra.mxu0 0
        %483 = vmatprep.subr.bf16.mxu0 0
        %484 = vmatpush1.bf16.msra.mxu0 0
        %485 = vmatprep.subr.bf16.mxu0 0
        %486 = vmatpush1.bf16.msra.mxu0 0
        %487 = vmatprep.subr.bf16.mxu0 0
        %488 = vmatpush1.bf16.msra.mxu0 0
        %489 = vmatprep.subr.bf16.mxu0 0
        %490 = vmatpush1.bf16.msra.mxu0 0
        %491 = vmatprep.subr.bf16.mxu0 0
        %492 = vmatpush1.bf16.msra.mxu0 0
        %493 = vmatprep.subr.bf16.mxu0 0
        %494 = vmatpush1.bf16.msra.mxu0 0
        %495 = vmatprep.subr.bf16.mxu0 0
        %496 = vmatpush1.bf16.msra.mxu0 0
        %497 = vmatprep.subr.bf16.mxu0 0
        %498 = vmatpush1.bf16.msra.mxu0 0
        %499 = vmatprep.subr.bf16.mxu0 0
        %500 = vmatpush1.bf16.msra.mxu0 0
        %501 = vmatprep.subr.bf16.mxu0 0
        %502 = vmatpush1.bf16.msra.mxu0 0
        %503 = vmatprep.subr.bf16.mxu0 0
        %504 = vmatpush1.bf16.msra.mxu0 0
        %505 = vmatprep.subr.bf16.mxu0 0
        %506 = vmatpush1.bf16.msra.mxu0 0
        %507 = vmatprep.mubr.bf16.mxu0 0
        %508 = vmatmul.mubr.bf16.gmra.mrb[0].mxu0 %v473
        %v509 = vpop.f32.mrb[0].mxu0
        %v510 = vadd.f32 0.0, %v509
        %v511 = vpop.f32.mrb[0].mxu0
        %v512 = vpop.f32.mrb[0].mxu0
        %v513 = vpop.f32.mrb[0].mxu0
        %514 = vdwg.mxu0
        %v515 = vadd.f32 %v454, %v510
        %v516 = vxor.u32 %v515, 2147483648
        %v517 = vmul.f32 %v516, 1.442695
        %v518 = vpow.pop %v517
        %v519 = vadd.f32 %v518, 1.0
        %v520 = vrcp.pop %v519
        %v521 = vmul.f32 1.0, %v520
        %v522 = vtanh.pop %v515
        %v523 = vmul.f32 %v521, %v449
        %525 = vrot.lane.b32.xlu0 %v522, 64
        %v526 = vpop.permute.xlu0 %525
        %v528 = vmul.f32 %v521, %v526
        %530 = vrot.lane.b32.xlu0 %v528, 32
        %v531 = vpop.permute.xlu0 %530
        %v533 = vadd.f32 %v523, %v531
        %v534 = vtanh.pop %v533
        %536 = vrot.lane.b32.xlu0 %v534, 64
        %v537 = vpop.permute.xlu0 %536
        %v539 = vmul.f32 %v521, %v537
        %v540 = vpack.c.bf16 %v539, %v539
        %v543 = vunpack.c.l.s4 1966171168
        %v544 = vunpack.c.0.s8 %v543
        %v545 = vlaneseq
        %v546 = vshrl.u32 %v545, 7
        %v547 = vsub.s32 %v544, %v546
        %v548 = vrot.slane %v540, %v547
        %v550 = vunpack.c.l.s4 1966171168
        %v551 = vunpack.c.0.s8 %v550
        %v552 = vlaneseq
        %v553 = vshrl.u32 %v552, 7
        %v554 = vsub.s32 %v551, %v553
        %v555 = vrot.slane %v548, %v554
        %556 = vrot.lane.b32.xlu0 %v555, 32
        %v557 = vpop.permute.xlu0 %556
        %s559 = scalar_lea.vmem %s300, %s451
        %vm560 = vcmask 253952
        %561 = vst.msk [vmem:[%s559] sm:$0x1] %vm560, %v557
      $region49: #{net_forward.2} parent=43 // loop_footer
        %s447 = sadd.s32 1, %s443
      $region50: #{net_forward.2} parent=43 // loop_footer_branch
        %442 = sbr.rel target = $region46
      $region51: #{net_forward.2} parent=43 // loop_exit
        _
      %p562 = scmp.lt.s32.totalorder %s17, 1
      %s563 = scalar_select %p562, %s17, 1
      %s564 = smul.addr %s563, 8
      %s565 = scalar_lea.vmem %s6, %s564
      // Predicated region
      $region52: #{net_forward.2} parent=43 // pred_check
        %p566 = pneg %p181
      $region53: #{net_forward.2} parent=43 // pred_check_branch
        %568 = sbr.rel (%p566) target = $region55
      $region54: #{net_forward.2} parent=43 // pred_region
        _
      $region55: #{net_forward.2} parent=43 // pred_fallthru
        _
    $region44: #{net_forward.2} parent=5 // pred_fallthru
      _
    %p569 = scmp.le.s32.totalorder 2, %s12
    // Predicated region
    $region56: #{net_forward.2} parent=5 // pred_check
      %p570 = pneg %p569
    $region57: #{net_forward.2} parent=5 // pred_check_branch
      %572 = sbr.rel (%p570) target = $region59
    $region58: #{net_forward.2} parent=5 // pred_region
      %s573 = ssub.s32 %s12, 2
      // Predicated region
      $region60: #{net_forward.2} parent=58 // pred_check
        %p574 = pneg %p187
      $region61: #{net_forward.2} parent=58 // pred_check_branch
        %576 = sbr.rel (%p574) target = $region63
      $region62: #{net_forward.2} parent=58 // pred_region
        %p577 = scmp.lt.s32.totalorder %s18, 1
        %s578 = scalar_select %p577, %s18, 1
        %s579 = smul.addr %s578, 8
        %s580 = scalar_lea.vmem %s6, %s579
      $region63: #{net_forward.2} parent=58 // pred_fallthru
        _
    $region59: #{net_forward.2} parent=5 // pred_fallthru
      _
  $region6: #{net_forward.2} parent=0 // loop_footer
    %s16 = sadd.s32 1, %s12
  $region7: #{net_forward.2} parent=0 // loop_footer_branch
    %11 = sbr.rel target = $region3
  $region8: #{net_forward.2} parent=0 // loop_exit
    _

// kernel: net_forward.3
$region0: #{net_forward.3}
  #allocation0 [shape = 'u32[]', space=smem, size = 0x4, offset = 0x4, fixed_abs, tag = 'smem constant byte address 0x4 - core index']
  #allocation1 [shape = 'u32[144,128]{1,0:T(1,128)}', space=vmem, size = 0x12000, scoped, tag = 'internal scratch']
  %s0 = inlined_call_operand.vmem [shape: bf16[16,32], index: 0, kind: input, shape index: {}]
  %s1 = inlined_call_operand.vmem [shape: bf16[16,32], index: 1, kind: input, shape index: {}]
  %s2 = inlined_call_operand.vmem [shape: bf16[32,64], index: 2, kind: input, shape index: {}]
  %s3 = inlined_call_operand.vmem [shape: bf16[32,64], index: 3, kind: input, shape index: {}]
  %s4 = inlined_call_operand.vmem [shape: f32[1,64], index: 4, kind: input, shape index: {}]
  %s5 = inlined_call_operand.vmem [shape: bf16[64,6], index: 5, kind: input, shape index: {}]
  %s6 = inlined_call_operand.vmem [shape: f32[1,6], index: 6, kind: input, shape index: {}]
  %s7 = inlined_call_operand.vmem [shape: f32[16,6], index: 7, kind: output, shape index: {}]
  %s8 = sld [smem:[#allocation0]]
  $region38: #{net_forward.3} parent=0
    _
  %s10 = ssub.s32 1, %s8
  %s11 = scalar_select 0, %s10, %s8
  // Predicated region
  $region2: #{net_forward.3} parent=0 // pred_check
    _
  $region3: #{net_forward.3} parent=0 // pred_check_branch
    %13 = sbr.rel (0) target = $region5
  $region4: #{net_forward.3} parent=0 // pred_region
    _
  $region5: #{net_forward.3} parent=0 // pred_fallthru
    _
  // Predicated region
  $region6: #{net_forward.3} parent=0 // pred_check
    _
  $region7: #{net_forward.3} parent=0 // pred_check_branch
    %15 = sbr.rel (0) target = $region9
  $region8: #{net_forward.3} parent=0 // pred_region
    _
  $region9: #{net_forward.3} parent=0 // pred_fallthru
    _
  // Predicated region
  $region10: #{net_forward.3} parent=0 // pred_check
    _
  $region11: #{net_forward.3} parent=0 // pred_check_branch
    %17 = sbr.rel (0) target = $region13
  $region12: #{net_forward.3} parent=0 // pred_region
    _
  $region13: #{net_forward.3} parent=0 // pred_fallthru
    _
  // Predicated region
  $region14: #{net_forward.3} parent=0 // pred_check
    _
  $region15: #{net_forward.3} parent=0 // pred_check_branch
    %19 = sbr.rel (0) target = $region17
  $region16: #{net_forward.3} parent=0 // pred_region
    _
  $region17: #{net_forward.3} parent=0 // pred_fallthru
    _
  // Predicated region
  $region18: #{net_forward.3} parent=0 // pred_check
    _
  $region19: #{net_forward.3} parent=0 // pred_check_branch
    %21 = sbr.rel (0) target = $region21
  $region20: #{net_forward.3} parent=0 // pred_region
    _
  $region21: #{net_forward.3} parent=0 // pred_fallthru
    _
  // Predicated region
  $region22: #{net_forward.3} parent=0 // pred_check
    _
  $region23: #{net_forward.3} parent=0 // pred_check_branch
    %23 = sbr.rel (0) target = $region25
  $region24: #{net_forward.3} parent=0 // pred_region
    _
  $region25: #{net_forward.3} parent=0 // pred_fallthru
    _
  // Predicated region
  $region26: #{net_forward.3} parent=0 // pred_check
    _
  $region27: #{net_forward.3} parent=0 // pred_check_branch
    %25 = sbr.rel (0) target = $region29
  $region28: #{net_forward.3} parent=0 // pred_region
    _
  $region29: #{net_forward.3} parent=0 // pred_fallthru
    _
  %v27 = vld [vmem:[%s0] sm:$0xf]
  %v28 = vld [vmem:[%s0 + $0x4] sm:$0xf]
  %v29 = vld [vmem:[%s2] sm:$0xf]
  %v30 = vld [vmem:[%s2 + $0x4] sm:$0xf]
  %v31 = vld [vmem:[%s2 + $0x8] sm:$0xf]
  %v32 = vld [vmem:[%s2 + $0xc] sm:$0xf]
  %v33 = vld [vmem:[%s1] sm:$0xf]
  %v34 = vld [vmem:[%s1 + $0x4] sm:$0xf]
  %v35 = vld [vmem:[%s3] sm:$0xf]
  %v36 = vld [vmem:[%s3 + $0x4] sm:$0xf]
  %v37 = vld [vmem:[%s3 + $0x8] sm:$0xf]
  %v38 = vld [vmem:[%s3 + $0xc] sm:$0xf]
  %v41 = vunpack.c.l.b16 %v33
  %v42 = vunpack.c.l.b16 %v34
  %v43 = vpack.c.b16 %v42, %v41
  %v48 = vunpack.c.l.b16 %v35
  %v49 = vunpack.c.l.b16 %v36
  %v50 = vunpack.c.l.b16 %v37
  %v51 = vunpack.c.l.b16 %v38
  %v52 = vpack.c.b16 %v49, %v48
  %v53 = vpack.c.b16 %v51, %v50
  %vm56 = vcmask 261120
  %v58 = vsel %vm56, %v43, 0
  %60 = vmatprep.subr.bf16.mxu0 0
  %61 = vmatpush1.bf16.msra.mxu0 %v52
  %62 = vmatprep.subr.bf16.mxu0 0
  %63 = vmatpush1.bf16.msra.mxu0 %v53
  %64 = vmatprep.subr.bf16.mxu0 0
  %65 = vmatpush1.bf16.msra.mxu0 0
  %66 = vmatprep.subr.bf16.mxu0 0
  %67 = vmatpush1.bf16.msra.mxu0 0
  %68 = vmatprep.subr.bf16.mxu0 0
  %69 = vmatpush1.bf16.msra.mxu0 0
  %70 = vmatprep.subr.bf16.mxu0 0
  %71 = vmatpush1.bf16.msra.mxu0 0
  %72 = vmatprep.subr.bf16.mxu0 0
  %73 = vmatpush1.bf16.msra.mxu0 0
  %74 = vmatprep.subr.bf16.mxu0 0
  %75 = vmatpush1.bf16.msra.mxu0 0
  %76 = vmatprep.subr.bf16.mxu0 0
  %77 = vmatpush1.bf16.msra.mxu0 0
  %78 = vmatprep.subr.bf16.mxu0 0
  %79 = vmatpush1.bf16.msra.mxu0 0
  %80 = vmatprep.subr.bf16.mxu0 0
  %81 = vmatpush1.bf16.msra.mxu0 0
  %82 = vmatprep.subr.bf16.mxu0 0
  %83 = vmatpush1.bf16.msra.mxu0 0
  %84 = vmatprep.subr.bf16.mxu0 0
  %85 = vmatpush1.bf16.msra.mxu0 0
  %86 = vmatprep.subr.bf16.mxu0 0
  %87 = vmatpush1.bf16.msra.mxu0 0
  %88 = vmatprep.subr.bf16.mxu0 0
  %89 = vmatpush1.bf16.msra.mxu0 0
  %90 = vmatprep.subr.bf16.mxu0 0
  %91 = vmatpush1.bf16.msra.mxu0 0
  %92 = vmatprep.mubr.bf16.mxu0 0
  %93 = vmatmul.mubr.bf16.gmra.mrb[0].mxu0 %v58
  %v94 = vpop.f32.mrb[0].mxu0
  %v95 = vadd.f32 0.0, %v94
  %v96 = vpop.f32.mrb[0].mxu0
  %v97 = vpop.f32.mrb[0].mxu0
  %v98 = vadd.f32 0.0, %v97
  %v99 = vpop.f32.mrb[0].mxu0
  %100 = vdwg.mxu0
  %v103 = vunpack.c.l.b16 %v27
  %v104 = vunpack.c.l.b16 %v28
  %v105 = vpack.c.b16 %v104, %v103
  %v110 = vunpack.c.l.b16 %v29
  %v111 = vunpack.c.l.b16 %v30
  %v112 = vunpack.c.l.b16 %v31
  %v113 = vunpack.c.l.b16 %v32
  %v114 = vpack.c.b16 %v111, %v110
  %v115 = vpack.c.b16 %v113, %v112
  %v119 = vsel %vm56, %v105, 0
  %121 = vmatprep.subr.bf16.mxu0 0
  %122 = vmatpush1.bf16.msra.mxu0 %v114
  %123 = vmatprep.subr.bf16.mxu0 0
  %124 = vmatpush1.bf16.msra.mxu0 %v115
  %125 = vmatprep.subr.bf16.mxu0 0
  %126 = vmatpush1.bf16.msra.mxu0 0
  %127 = vmatprep.subr.bf16.mxu0 0
  %128 = vmatpush1.bf16.msra.mxu0 0
  %129 = vmatprep.subr.bf16.mxu0 0
  %130 = vmatpush1.bf16.msra.mxu0 0
  %131 = vmatprep.subr.bf16.mxu0 0
  %132 = vmatpush1.bf16.msra.mxu0 0
  %133 = vmatprep.subr.bf16.mxu0 0
  %134 = vmatpush1.bf16.msra.mxu0 0
  %135 = vmatprep.subr.bf16.mxu0 0
  %136 = vmatpush1.bf16.msra.mxu0 0
  %137 = vmatprep.subr.bf16.mxu0 0
  %138 = vmatpush1.bf16.msra.mxu0 0
  %139 = vmatprep.subr.bf16.mxu0 0
  %140 = vmatpush1.bf16.msra.mxu0 0
  %141 = vmatprep.subr.bf16.mxu0 0
  %142 = vmatpush1.bf16.msra.mxu0 0
  %143 = vmatprep.subr.bf16.mxu0 0
  %144 = vmatpush1.bf16.msra.mxu0 0
  %145 = vmatprep.subr.bf16.mxu0 0
  %146 = vmatpush1.bf16.msra.mxu0 0
  %147 = vmatprep.subr.bf16.mxu0 0
  %148 = vmatpush1.bf16.msra.mxu0 0
  %149 = vmatprep.subr.bf16.mxu0 0
  %150 = vmatpush1.bf16.msra.mxu0 0
  %151 = vmatprep.subr.bf16.mxu0 0
  %152 = vmatpush1.bf16.msra.mxu0 0
  %153 = vmatprep.mubr.bf16.mxu0 0
  %154 = vmatmul.mubr.bf16.gmra.mrb[0].mxu0 %v119
  %v155 = vpop.f32.mrb[0].mxu0
  %v156 = vadd.f32 %v95, %v155
  %v157 = vpop.f32.mrb[0].mxu0
  %v158 = vpop.f32.mrb[0].mxu0
  %v159 = vadd.f32 %v98, %v158
  %v160 = vpop.f32.mrb[0].mxu0
  %161 = vdwg.mxu0
  %v162 = vld [vmem:[%s4] sm:$0x1]
  %v164 = vlaneseq
  %v165 = vshrl.u32 %v164, 7
  %v166 = vsub.s32 0, %v165
  %v167 = vrot.slane %v162, %v166
  %v169 = vadd.f32 %v156, %v167
  %v170 = vadd.f32 %v159, %v167
  %v171 = vpack.c.bf16 %v170, %v169
  %v172 = vld [vmem:[%s5] sm:$0xf]
  %v173 = vld [vmem:[%s5 + $0x4] sm:$0xf]
  %v174 = vld [vmem:[%s5 + $0x8] sm:$0xf]
  %v175 = vld [vmem:[%s5 + $0xc] sm:$0xf]
  %v176 = vld [vmem:[%s5 + $0x10] sm:$0xf]
  %v177 = vld [vmem:[%s5 + $0x14] sm:$0xf]
  %v178 = vld [vmem:[%s5 + $0x18] sm:$0xf]
  %v179 = vld [vmem:[%s5 + $0x1c] sm:$0xf]
  %v180 = vld [vmem:[%s6] sm:$0x1]
  %v182 = vlaneseq
  %v183 = vshrl.u32 %v182, 7
  %v184 = vsub.s32 0, %v183
  %v185 = vrot.slane %v180, %v184
  %v195 = vunpack.c.l.b16 %v172
  %v196 = vunpack.c.l.b16 %v173
  %v197 = vunpack.c.l.b16 %v174
  %v198 = vunpack.c.l.b16 %v175
  %v199 = vunpack.c.l.b16 %v176
  %v200 = vunpack.c.l.b16 %v177
  %v201 = vunpack.c.l.b16 %v178
  %v202 = vunpack.c.l.b16 %v179
  %v203 = vpack.c.b16 %v196, %v195
  %v204 = vpack.c.b16 %v198, %v197
  %v205 = vpack.c.b16 %v200, %v199
  %v206 = vpack.c.b16 %v202, %v201
  %vm211 = vcmask 523264
  %v213 = vsel %vm211, %v171, 0
  %215 = vmatprep.subr.bf16.mxu0 0
  %216 = vmatpush1.bf16.msra.mxu0 %v203
  %217 = vmatprep.subr.bf16.mxu0 0
  %218 = vmatpush1.bf16.msra.mxu0 %v204
  %219 = vmatprep.subr.bf16.mxu0 0
  %220 = vmatpush1.bf16.msra.mxu0 %v205
  %221 = vmatprep.subr.bf16.mxu0 0
  %222 = vmatpush1.bf16.msra.mxu0 %v206
  %223 = vmatprep.subr.bf16.mxu0 0
  %224 = vmatpush1.bf16.msra.mxu0 0
  %225 = vmatprep.subr.bf16.mxu0 0
  %226 = vmatpush1.bf16.msra.mxu0 0
  %227 = vmatprep.subr.bf16.mxu0 0
  %228 = vmatpush1.bf16.msra.mxu0 0
  %229 = vmatprep.subr.bf16.mxu0 0
  %230 = vmatpush1.bf16.msra.mxu0 0
  %231 = vmatprep.subr.bf16.mxu0 0
  %232 = vmatpush1.bf16.msra.mxu0 0
  %233 = vmatprep.subr.bf16.mxu0 0
  %234 = vmatpush1.bf16.msra.mxu0 0
  %235 = vmatprep.subr.bf16.mxu0 0
  %236 = vmatpush1.bf16.msra.mxu0 0
  %237 = vmatprep.subr.bf16.mxu0 0
  %238 = vmatpush1.bf16.msra.mxu0 0
  %239 = vmatprep.subr.bf16.mxu0 0
  %240 = vmatpush1.bf16.msra.mxu0 0
  %241 = vmatprep.subr.bf16.mxu0 0
  %242 = vmatpush1.bf16.msra.mxu0 0
  %243 = vmatprep.subr.bf16.mxu0 0
  %244 = vmatpush1.bf16.msra.mxu0 0
  %245 = vmatprep.subr.bf16.mxu0 0
  %246 = vmatpush1.bf16.msra.mxu0 0
  %247 = vmatprep.mubr.bf16.mxu0 0
  %248 = vmatmul.mubr.bf16.gmra.mrb[0].mxu0 %v213
  %v249 = vpop.f32.mrb[0].mxu0
  %v250 = vadd.f32 %v185, %v249
  %v251 = vpop.f32.mrb[0].mxu0
  %v252 = vpop.f32.mrb[0].mxu0
  %v253 = vadd.f32 %v185, %v252
  %v254 = vpop.f32.mrb[0].mxu0
  %255 = vdwg.mxu0
  %vm256 = vcmask 48128
  %v257 = vsel %vm256, %v250, -inf
  %258 = vmax.xlane.f32.xlu0 %v257
  %v259 = vpop.xlane.xlu0 %258
  %v260 = vsel %vm256, %v253, -inf
  %261 = vmax.xlane.f32.xlu0 %v260
  %v262 = vpop.xlane.xlu0 %261
  %v263 = vsub.f32 %v250, %v259
  %v264 = vsub.f32 %v253, %v262
  %v265 = vmul.f32 %v263, 1.442695
  %v266 = vpow.pop %v265
  %v267 = vmul.f32 %v264, 1.442695
  %v268 = vpow.pop %v267
  %v269 = vsel %vm256, %v266, 0.0
  %270 = vadd.xlane.f32.xlu0 %v269
  %v271 = vpop.xlane.xlu0 %270
  %v272 = vsel %vm256, %v268, 0.0
  %273 = vadd.xlane.f32.xlu0 %v272
  %v274 = vpop.xlane.xlu0 %273
  %v275 = vlog2.pop %v271
  %v276 = vmul.f32 %v275, 0.6931472
  %v277 = vlog2.pop %v274
  %v278 = vmul.f32 %v277, 0.6931472
  %v279 = vsub.f32 %v263, %v276
  %v280 = vsub.f32 %v264, %v278
  %281 = vst.msk [vmem:[%s7] sm:$0xff] %vm256, %v279
  %282 = vst.msk [vmem:[%s7 + $0x8] sm:$0xff] %vm256, %v280
  // Predicated region
  $region30: #{net_forward.3} parent=0 // pred_check
    _
  $region31: #{net_forward.3} parent=0 // pred_check_branch
    %284 = sbr.rel (0) target = $region33
  $region32: #{net_forward.3} parent=0 // pred_region
    _
  $region33: #{net_forward.3} parent=0 // pred_fallthru
    _
  // Predicated region
  $region34: #{net_forward.3} parent=0 // pred_check
    _
  $region35: #{net_forward.3} parent=0 // pred_check_branch
    %286 = sbr.rel (0) target = $region37
  $region36: #{net_forward.3} parent=0 // pred_region
    _
  $region37: #{net_forward.3} parent=0 // pred_fallthru
    _

</llo_original>
